<compile_context>
chip_gen: v7x
topology: tpu7x:2x2x1
jax: 0.10.0
libtpu: 0.0.40
codegen_flags: <defaults>
</compile_context>

<pallas_src>
import jax
import jax.numpy as jnp
from jax.experimental import pallas as pl
from jax.experimental.pallas import tpu as pltpu


def _round_up(x, m):
    return (x + m - 1) // m * m


# ---------------------------------------------------------------------------
# Kernel
# ---------------------------------------------------------------------------
def _psi_kernel(x_ref, w1_ref, b1_ref, w2_ref, b2_ref, w3_ref, b3_ref, out_ref):
    """Fused MLP tile: Linear+ReLU -> Linear+ReLU -> Linear.

    Normalization is pre-folded into (w1, b1).  Layer 1 runs in f32 (tiny K,
    keeps the folded 1/denom scale exact); layers 2/3 are bf16 MXU matmuls with
    f32 accumulation; bias-add / ReLU epilogues stay f32 on the VPU.
    """
    x = x_ref[...].astype(jnp.float32)                         # (TB, obs_dim)

    h1 = jnp.dot(x, w1_ref[...], preferred_element_type=jnp.float32)
    h1 = jnp.maximum(h1 + b1_ref[...], 0.0)

    h2 = jnp.dot(h1.astype(jnp.bfloat16), w2_ref[...],
                 preferred_element_type=jnp.float32)
    h2 = jnp.maximum(h2 + b2_ref[...], 0.0)

    q = jnp.dot(h2.astype(jnp.bfloat16), w3_ref[...],
                preferred_element_type=jnp.float32)
    out_ref[...] = (q + b3_ref[...]).astype(out_ref.dtype)     # unpadded store


# ---------------------------------------------------------------------------
# Parameter preparation (one-time, outside the per-call path)
# ---------------------------------------------------------------------------
def prepare_params(params, *, normalize_inputs, obs_low=None, obs_high=None):
    """Fold normalization into layer 1 and cast layers 2/3 to bf16.

    w1 stays f32 (obs_dim x 256 is tiny) so degenerate obs bounds (denom near
    the 1e-6 clamp) don't lose precision through a bf16 cast of w1/denom.
    Biases stay f32.  No output-dim padding (lane masking is cheaper than 4x
    extra HBM bytes + a compaction copy for out_dim = action_dim*phi_dim).
    """
    w1, b1, w2, b2, w3, b3 = [jnp.asarray(p, jnp.float32) for p in params]
    obs_dim = w1.shape[0]

    if normalize_inputs:
        low = jnp.asarray(obs_low, jnp.float32).reshape(obs_dim)
        high = jnp.asarray(obs_high, jnp.float32).reshape(obs_dim)
        denom = jnp.maximum(high - low, 1e-6)
        # (x - low)/denom @ w1 + b1 == x @ (w1/denom[:,None]) + (b1 - (low/denom) @ w1)
        b1 = b1 - (low / denom).reshape(1, obs_dim) @ w1
        w1 = w1 / denom[:, None]

    prepared = (w1, b1,
                w2.astype(jnp.bfloat16), b2,
                w3.astype(jnp.bfloat16), b3)
    return prepared, w3.shape[1]


# ---------------------------------------------------------------------------
# Batch tile selection
# ---------------------------------------------------------------------------
def _choose_batch_tile(B, block_b, min_tiles=2):
    """Pick a sublane-aligned batch tile that (a) minimizes padded rows,
    (b) guarantees >= min_tiles grid steps whenever B is big enough (so the
    'parallel' axis shards across v7x's two TensorCores), (c) never exceeds
    block_b rows per tile."""
    block_b = max(8, _round_up(block_b, 8))
    force_multi = B >= 8 * min_tiles
    best = None
    for tb in range(8, block_b + 1, 8):
        n = -(-B // tb)
        if force_multi and n < min_tiles:
            continue
        b_pad = n * tb
        key = (b_pad, n)                 # least padding, then fewest grid steps
        if best is None or key < best[0]:
            best = (key, tb, b_pad)
    _, tb, b_pad = best
    return tb, b_pad


# ---------------------------------------------------------------------------
# Forward wrapper
# ---------------------------------------------------------------------------
def psi_forward(x, prepared_params, *, action_dim, phi_dim, block_b=1024,
                out_dtype=jnp.bfloat16):
    """Runs the fused Pallas kernel and reshapes to (-1, action_dim, phi_dim)."""
    w1, b1, w2, b2, w3, b3 = prepared_params
    B, obs_dim = x.shape
    out_dim = action_dim * phi_dim
    assert w3.shape[1] == out_dim
    h1_dim = w1.shape[1]
    h2_dim = w2.shape[1]

    tb, b_pad = _choose_batch_tile(B, block_b)

    # Stream x in bf16 (cast fuses with the pad); accuracy is unchanged vs. the
    # previous in-kernel bf16 cast since accumulation stays f32.
    x = x.astype(jnp.bfloat16)
    if b_pad != B:
        x = jnp.pad(x, ((0, b_pad - B), (0, 0)))

    grid = (b_pad // tb,)

    flops = 2 * b_pad * (obs_dim * h1_dim + h1_dim * h2_dim + h2_dim * out_dim)
    bytes_accessed = (b_pad * obs_dim * 2                        # x (bf16)
                      + w1.size * 4 + (w2.size + w3.size) * 2    # weights
                      + (b1.size + b2.size + b3.size) * 4        # biases (f32)
                      + b_pad * out_dim * jnp.dtype(out_dtype).itemsize)

    q_pad = pl.pallas_call(
        _psi_kernel,
        out_shape=jax.ShapeDtypeStruct((b_pad, out_dim), out_dtype),
        grid=grid,
        in_specs=[
            pl.BlockSpec((tb, obs_dim), lambda i: (i, 0)),       # x: streamed
            pl.BlockSpec(w1.shape, lambda i: (0, 0)),            # weights: resident
            pl.BlockSpec(b1.shape, lambda i: (0, 0)),
            pl.BlockSpec(w2.shape, lambda i: (0, 0)),
            pl.BlockSpec(b2.shape, lambda i: (0, 0)),
            pl.BlockSpec(w3.shape, lambda i: (0, 0)),
            pl.BlockSpec(b3.shape, lambda i: (0, 0)),
        ],
        out_specs=pl.BlockSpec((tb, out_dim), lambda i: (i, 0)),
        compiler_params=pltpu.CompilerParams(
            dimension_semantics=("parallel",)),
        cost_estimate=pl.CostEstimate(
            flops=flops, transcendentals=0, bytes_accessed=bytes_accessed),
    )(x, w1, b1, w2, b2, w3, b3)

    q = q_pad if b_pad == B else q_pad[:B]     # skip the copy when no padding
    return q.reshape(-1, action_dim, phi_dim)


# ---------------------------------------------------------------------------
# Synthetic init + pure-JAX reference
# ---------------------------------------------------------------------------
def init_params(key, obs_dim, action_dim, phi_dim, net_arch):
    """Deterministic synthetic init (stand-in for layer_init / orthogonal)."""
    dims = [obs_dim] + list(net_arch) + [action_dim * phi_dim]
    params = []
    for i in range(len(dims) - 1):
        key, wk = jax.random.split(key)
        fan_in = dims[i]
        w = jax.random.normal(wk, (dims[i], dims[i + 1]), jnp.float32) / jnp.sqrt(fan_in)
        b = jnp.zeros((1, dims[i + 1]), jnp.float32)
        params += [w, b]
    return tuple(params)


def psi_reference(x, params, *, action_dim, phi_dim, normalize_inputs,
                  obs_low=None, obs_high=None):
    """Pure-JAX f32 reference of the original PyTorch forward."""
    w1, b1, w2, b2, w3, b3 = params
    if normalize_inputs:
        denom = jnp.maximum(obs_high - obs_low, 1e-6)
        x = (x - obs_low) / denom
    h1 = jax.nn.relu(x @ w1 + b1)
    h2 = jax.nn.relu(h1 @ w2 + b2)
    q = h2 @ w3 + b3
    return q.reshape(-1, action_dim, phi_dim)


if __name__ == "__main__":
    # Small shapes consistent with the module (default net_arch=[256, 256]).
    obs_dim = 16
    action_dim = 4
    phi_dim = 8
    net_arch = [256, 256]

    key = jax.random.PRNGKey(0)
    key, xk1, xk2 = jax.random.split(key, 3)

    obs_low = -jnp.ones((obs_dim,), jnp.float32)
    obs_high = jnp.ones((obs_dim,), jnp.float32)

    params = init_params(key, obs_dim, action_dim, phi_dim, net_arch)
    prepared, _ = prepare_params(params, normalize_inputs=True,
                                 obs_low=obs_low, obs_high=obs_high)

    def check(batch, xkey):
        x = jax.random.normal(xkey, (batch, obs_dim), jnp.float32)
        out = psi_forward(x, prepared, action_dim=action_dim, phi_dim=phi_dim)
        out = jax.block_until_ready(out)
        ref = psi_reference(x, params,
                            action_dim=action_dim, phi_dim=phi_dim,
                            normalize_inputs=True,
                            obs_low=obs_low.reshape(1, -1),
                            obs_high=obs_high.reshape(1, -1))
        assert out.shape == (batch, action_dim, phi_dim), out.shape
        out_f32 = out.astype(jnp.float32)
        max_err = float(jnp.max(jnp.abs(out_f32 - ref)))
        # bf16 matmul operands / bf16 output vs f32 reference -> loose tolerance.
        assert jnp.allclose(out_f32, ref, atol=7.5e-2, rtol=5e-2), max_err

    check(2, xk1)    # single-tile path (B < 16)
    check(48, xk2)   # multi-tile path (>= 2 grid steps, megacore sharding)

    print("KERNEL_OK")
</pallas_src>

<mosaic_0001>
module attributes {stable_mosaic.version = 11 : i64} {
  func.func @_psi_kernel(%arg0: i32, %arg1: memref<8x16xbf16, #tpu.memory_space<vmem>>, %arg2: memref<16x256xf32, #tpu.memory_space<vmem>>, %arg3: memref<1x256xf32, #tpu.memory_space<vmem>>, %arg4: memref<256x256xbf16, #tpu.memory_space<vmem>>, %arg5: memref<1x256xf32, #tpu.memory_space<vmem>>, %arg6: memref<256x32xbf16, #tpu.memory_space<vmem>>, %arg7: memref<1x32xf32, #tpu.memory_space<vmem>>, %arg8: memref<8x32xbf16, #tpu.memory_space<vmem>>) attributes {dimension_semantics = [#tpu.dimension_semantics<parallel>], iteration_bounds = array<i64: 1>, scalar_prefetch = 0 : i64, scratch_operands = 0 : i64, tpu.core_type = #tpu.core_type<tc>, window_params = [{transform_indices = @transform_0, window_bounds = array<i64: 8, 16>}, {pipeline_mode = #tpu.pipeline_mode<synchronous>, transform_indices = @transform_1, window_bounds = array<i64: 16, 256>}, {pipeline_mode = #tpu.pipeline_mode<synchronous>, transform_indices = @transform_2, window_bounds = array<i64: 1, 256>}, {pipeline_mode = #tpu.pipeline_mode<synchronous>, transform_indices = @transform_3, window_bounds = array<i64: 256, 256>}, {pipeline_mode = #tpu.pipeline_mode<synchronous>, transform_indices = @transform_4, window_bounds = array<i64: 1, 256>}, {pipeline_mode = #tpu.pipeline_mode<synchronous>, transform_indices = @transform_5, window_bounds = array<i64: 256, 32>}, {pipeline_mode = #tpu.pipeline_mode<synchronous>, transform_indices = @transform_6, window_bounds = array<i64: 1, 32>}, {transform_indices = @transform_7, window_bounds = array<i64: 8, 32>}]} {
    %c0 = arith.constant 0 : index
    %c0_0 = arith.constant 0 : index
    %0 = vector.load %arg1[%c0, %c0_0] : memref<8x16xbf16, #tpu.memory_space<vmem>>, vector<8x16xbf16>
    %1 = arith.extf %0 : vector<8x16xbf16> to vector<8x16xf32>
    %c0_1 = arith.constant 0 : index
    %c0_2 = arith.constant 0 : index
    %2 = vector.load %arg2[%c0_1, %c0_2] : memref<16x256xf32, #tpu.memory_space<vmem>>, vector<16x256xf32>
    %cst = arith.constant dense<0.000000e+00> : vector<8x256xf32>
    %3 = tpu.matmul %1, %2, %cst {dimension_numbers = #tpu.dot_dimension_numbers<[1], [0], [0], [1], [0, 0, 1, 1], [], []>} : vector<8x16xf32>, vector<16x256xf32>, vector<8x256xf32> -> vector<8x256xf32>
    %c0_3 = arith.constant 0 : index
    %c0_4 = arith.constant 0 : index
    %4 = vector.load %arg3[%c0_3, %c0_4] : memref<1x256xf32, #tpu.memory_space<vmem>>, vector<1x256xf32>
    %5 = vector.broadcast %4 : vector<1x256xf32> to vector<8x256xf32>
    %6 = arith.addf %3, %5 : vector<8x256xf32>
    %cst_5 = arith.constant 0.000000e+00 : f32
    %7 = vector.broadcast %cst_5 : f32 to vector<8x256xf32>
    %8 = arith.maximumf %6, %7 : vector<8x256xf32>
    %9 = arith.truncf %8 : vector<8x256xf32> to vector<8x256xbf16>
    %c0_6 = arith.constant 0 : index
    %c0_7 = arith.constant 0 : index
    %10 = vector.load %arg4[%c0_6, %c0_7] : memref<256x256xbf16, #tpu.memory_space<vmem>>, vector<256x256xbf16>
    %cst_8 = arith.constant dense<0.000000e+00> : vector<8x256xf32>
    %11 = tpu.matmul %9, %10, %cst_8 {dimension_numbers = #tpu.dot_dimension_numbers<[1], [0], [0], [1], [0, 0, 1, 1], [], []>} : vector<8x256xbf16>, vector<256x256xbf16>, vector<8x256xf32> -> vector<8x256xf32>
    %c0_9 = arith.constant 0 : index
    %c0_10 = arith.constant 0 : index
    %12 = vector.load %arg5[%c0_9, %c0_10] : memref<1x256xf32, #tpu.memory_space<vmem>>, vector<1x256xf32>
    %13 = vector.broadcast %12 : vector<1x256xf32> to vector<8x256xf32>
    %14 = arith.addf %11, %13 : vector<8x256xf32>
    %cst_11 = arith.constant 0.000000e+00 : f32
    %15 = vector.broadcast %cst_11 : f32 to vector<8x256xf32>
    %16 = arith.maximumf %14, %15 : vector<8x256xf32>
    %17 = arith.truncf %16 : vector<8x256xf32> to vector<8x256xbf16>
    %c0_12 = arith.constant 0 : index
    %c0_13 = arith.constant 0 : index
    %18 = vector.load %arg6[%c0_12, %c0_13] : memref<256x32xbf16, #tpu.memory_space<vmem>>, vector<256x32xbf16>
    %cst_14 = arith.constant dense<0.000000e+00> : vector<8x32xf32>
    %19 = tpu.matmul %17, %18, %cst_14 {dimension_numbers = #tpu.dot_dimension_numbers<[1], [0], [0], [1], [0, 0, 1, 1], [], []>} : vector<8x256xbf16>, vector<256x32xbf16>, vector<8x32xf32> -> vector<8x32xf32>
    %c0_15 = arith.constant 0 : index
    %c0_16 = arith.constant 0 : index
    %20 = vector.load %arg7[%c0_15, %c0_16] : memref<1x32xf32, #tpu.memory_space<vmem>>, vector<1x32xf32>
    %21 = vector.broadcast %20 : vector<1x32xf32> to vector<8x32xf32>
    %22 = arith.addf %19, %21 : vector<8x32xf32>
    %23 = arith.truncf %22 : vector<8x32xf32> to vector<8x32xbf16>
    %c0_17 = arith.constant 0 : index
    %c0_18 = arith.constant 0 : index
    %24 = vector.load %arg8[%c0_17, %c0_18] : memref<8x32xbf16, #tpu.memory_space<vmem>>, vector<8x32xbf16>
    tpu.vector_store %arg8[%c0_17, %c0_18], %23 {strides = array<i32>} : memref<8x32xbf16, #tpu.memory_space<vmem>>, vector<8x32xbf16>,
    return
  }
  func.func @transform_0(%arg0: i32) -> (i32, i32) {
    %c0_i32 = arith.constant 0 : i32
    %c0_i32_0 = arith.constant 0 : i32
    return %arg0, %c0_i32 : i32, i32
  }
  func.func @transform_1(%arg0: i32) -> (i32, i32) {
    %c0_i32 = arith.constant 0 : i32
    %c0_i32_0 = arith.constant 0 : i32
    %c0_i32_1 = arith.constant 0 : i32
    return %c0_i32, %c0_i32_0 : i32, i32
  }
  func.func @transform_2(%arg0: i32) -> (i32, i32) {
    %c0_i32 = arith.constant 0 : i32
    %c0_i32_0 = arith.constant 0 : i32
    %c0_i32_1 = arith.constant 0 : i32
    return %c0_i32, %c0_i32_0 : i32, i32
  }
  func.func @transform_3(%arg0: i32) -> (i32, i32) {
    %c0_i32 = arith.constant 0 : i32
    %c0_i32_0 = arith.constant 0 : i32
    %c0_i32_1 = arith.constant 0 : i32
    return %c0_i32, %c0_i32_0 : i32, i32
  }
  func.func @transform_4(%arg0: i32) -> (i32, i32) {
    %c0_i32 = arith.constant 0 : i32
    %c0_i32_0 = arith.constant 0 : i32
    %c0_i32_1 = arith.constant 0 : i32
    return %c0_i32, %c0_i32_0 : i32, i32
  }
  func.func @transform_5(%arg0: i32) -> (i32, i32) {
    %c0_i32 = arith.constant 0 : i32
    %c0_i32_0 = arith.constant 0 : i32
    %c0_i32_1 = arith.constant 0 : i32
    return %c0_i32, %c0_i32_0 : i32, i32
  }
  func.func @transform_6(%arg0: i32) -> (i32, i32) {
    %c0_i32 = arith.constant 0 : i32
    %c0_i32_0 = arith.constant 0 : i32
    %c0_i32_1 = arith.constant 0 : i32
    return %c0_i32, %c0_i32_0 : i32, i32
  }
  func.func @transform_7(%arg0: i32) -> (i32, i32) {
    %c0_i32 = arith.constant 0 : i32
    %c0_i32_0 = arith.constant 0 : i32
    return %arg0, %c0_i32 : i32, i32
  }
}

</mosaic_0001>

<llo_original>
// kernel: tpu_custom_call.1
$region0: #{tpu_custom_call.1}
  #allocation0 [shape = 'u32[]', space=smem, size = 0x4, offset = 0x4, fixed_abs, tag = 'smem constant byte address 0x4 - core index']
  #allocation1 [shape = 'u32[144,128]{1,0:T(1,128)}', space=vmem, size = 0x12000, scoped, tag = 'internal scratch']
  %s0 = inlined_call_operand.vmem [shape: bf16[8,16], index: 0, kind: input, shape index: {}]
  %s1 = inlined_call_operand.vmem [shape: f32[16,256], index: 1, kind: input, shape index: {}]
  %s2 = inlined_call_operand.vmem [shape: f32[1,256], index: 2, kind: input, shape index: {}]
  %s3 = inlined_call_operand.hbm [shape: bf16[256,256], index: 3, kind: input, shape index: {}]
  %s4 = inlined_call_operand.vmem [shape: f32[1,256], index: 4, kind: input, shape index: {}]
  %s5 = inlined_call_operand.vmem [shape: bf16[256,32], index: 5, kind: input, shape index: {}]
  %s6 = inlined_call_operand.vmem [shape: f32[1,32], index: 6, kind: input, shape index: {}]
  %s7 = inlined_call_operand.hbm [shape: bf16[8,32], index: 7, kind: output, shape index: {}]
  %s8 = sld [smem:[#allocation0]]
  $region42: #{tpu_custom_call.1} parent=0
    _
  %s10 = ssub.s32 1, %s8
  %s11 = scalar_select 0, %s10, %s8
  $region1: #{tpu_custom_call.1} parent=0
    #allocation2 [shape = 'u8[131072]{0}', space=vmem, size = 0x20000, scoped, tag = 'input window, operand 3, single buffered']
    #allocation3 [shape = 's32[1]{0}', space=sflag, size = 0x4, scoped, tag = 'scoped memory for tpu_custom_call.1']
    #allocation4 [shape = 's32[1]{0}', space=sflag, size = 0x4, scoped, tag = 'scoped memory for tpu_custom_call.1']
    #allocation5 [shape = 'u8[2048]{0}', space=vmem, size = 0x800, scoped, tag = 'output window, operand 0, single buffered']
    %12 = vsyncpa [#allocation3], 0
    %13 = vsyncpa [#allocation4], 0
    // Predicated region
    $region2: #{tpu_custom_call.1} parent=1 // pred_check
      _
    $region3: #{tpu_custom_call.1} parent=1 // pred_check_branch
      %15 = sbr.rel (0) target = $region5
    $region4: #{tpu_custom_call.1} parent=1 // pred_region
      _
    $region5: #{tpu_custom_call.1} parent=1 // pred_fallthru
      _
    // Predicated region
    $region6: #{tpu_custom_call.1} parent=1 // pred_check
      _
    $region7: #{tpu_custom_call.1} parent=1 // pred_check_branch
      %17 = sbr.rel (0) target = $region9
    $region8: #{tpu_custom_call.1} parent=1 // pred_region
      _
    $region9: #{tpu_custom_call.1} parent=1 // pred_fallthru
      _
    // Predicated region
    $region10: #{tpu_custom_call.1} parent=1 // pred_check
      _
    $region11: #{tpu_custom_call.1} parent=1 // pred_check_branch
      %19 = sbr.rel (0) target = $region13
    $region12: #{tpu_custom_call.1} parent=1 // pred_region
      _
    $region13: #{tpu_custom_call.1} parent=1 // pred_fallthru
      _
    // Predicated region
    $region14: #{tpu_custom_call.1} parent=1 // pred_check
      _
    $region15: #{tpu_custom_call.1} parent=1 // pred_check_branch
      %21 = sbr.rel (0) target = $region17
    $region16: #{tpu_custom_call.1} parent=1 // pred_region
      %s23 = ssub.s32 4096, 4096
      %24 = vsyncadd [#allocation3], %s23
      %s25 = sshll.u32 [#allocation2], 4
      %s26 = int_to_ptr.vmem [resolvable:$true] %s25
      %31 = dma.hbm_to_vmem [thread:$0]  %s3, 4096, %s26, [#allocation3], 128, 128, 8
    $region17: #{tpu_custom_call.1} parent=1 // pred_fallthru
      _
    // Predicated region
    $region18: #{tpu_custom_call.1} parent=1 // pred_check
      _
    $region19: #{tpu_custom_call.1} parent=1 // pred_check_branch
      %33 = sbr.rel (0) target = $region21
    $region20: #{tpu_custom_call.1} parent=1 // pred_region
      _
    $region21: #{tpu_custom_call.1} parent=1 // pred_fallthru
      _
    // Predicated region
    $region22: #{tpu_custom_call.1} parent=1 // pred_check
      _
    $region23: #{tpu_custom_call.1} parent=1 // pred_check_branch
      %35 = sbr.rel (0) target = $region25
    $region24: #{tpu_custom_call.1} parent=1 // pred_region
      _
    $region25: #{tpu_custom_call.1} parent=1 // pred_fallthru
      _
    // Predicated region
    $region26: #{tpu_custom_call.1} parent=1 // pred_check
      _
    $region27: #{tpu_custom_call.1} parent=1 // pred_check_branch
      %37 = sbr.rel (0) target = $region29
    $region28: #{tpu_custom_call.1} parent=1 // pred_region
      _
    $region29: #{tpu_custom_call.1} parent=1 // pred_fallthru
      _
    // Predicated region
    $region30: #{tpu_custom_call.1} parent=1 // pred_check
      _
    $region31: #{tpu_custom_call.1} parent=1 // pred_check_branch
      %39 = sbr.rel (0) target = $region33
    $region32: #{tpu_custom_call.1} parent=1 // pred_region
      %40 = dma.done [#allocation3], 4096
    $region33: #{tpu_custom_call.1} parent=1 // pred_fallthru
      _
    %v42 = vld [vmem:[%s0] sm:$0xf]
    %v43 = vunpack.c.l.bf16 %v42
    %v44 = vld [vmem:[%s1] sm:$0xff]
    %v45 = vld [vmem:[%s1 + $0x8] sm:$0xff]
    %v46 = vld [vmem:[%s1 + $0x10] sm:$0xff]
    %v47 = vld [vmem:[%s1 + $0x18] sm:$0xff]
    %v48 = vld [vmem:[%s2] sm:$0x3]
    %v50 = vlaneseq
    %v51 = vshrl.u32 %v50, 7
    %v52 = vsub.s32 0, %v51
    %v53 = vrot.slane %v48, %v52
    %v54 = vlaneseq
    %v55 = vshrl.u32 %v54, 7
    %v56 = vsub.s32 1, %v55
    %v57 = vrot.slane %v48, %v56
    %vm60 = vcmask 130048
    %v62 = vsel %vm60, %v43, 0
    %64 = vmatprep.subr.mxu0 %v45
    %65 = vmatpush1.msra.mxu0 %v44
    %66 = vmatprep.subr.mxu0 %v47
    %67 = vmatpush1.msra.mxu0 %v46
    %68 = vmatprep.subr.mxu0 0.0
    %69 = vmatpush1.msra.mxu0 0.0
    %70 = vmatprep.subr.mxu0 0.0
    %71 = vmatpush1.msra.mxu0 0.0
    %72 = vmatprep.subr.mxu0 0.0
    %73 = vmatpush1.msra.mxu0 0.0
    %74 = vmatprep.subr.mxu0 0.0
    %75 = vmatpush1.msra.mxu0 0.0
    %76 = vmatprep.subr.mxu0 0.0
    %77 = vmatpush1.msra.mxu0 0.0
    %78 = vmatprep.subr.mxu0 0.0
    %79 = vmatpush1.msra.mxu0 0.0
    %80 = vmatprep.subr.mxu0 0.0
    %81 = vmatpush1.msra.mxu0 0.0
    %82 = vmatprep.subr.mxu0 0.0
    %83 = vmatpush1.msra.mxu0 0.0
    %84 = vmatprep.subr.mxu0 0.0
    %85 = vmatpush1.msra.mxu0 0.0
    %86 = vmatprep.subr.mxu0 0.0
    %87 = vmatpush1.msra.mxu0 0.0
    %88 = vmatprep.subr.mxu0 0.0
    %89 = vmatpush1.msra.mxu0 0.0
    %90 = vmatprep.subr.mxu0 0.0
    %91 = vmatpush1.msra.mxu0 0.0
    %92 = vmatprep.subr.mxu0 0.0
    %93 = vmatpush1.msra.mxu0 0.0
    %94 = vmatprep.subr.mxu0 0.0
    %95 = vmatpush1.msra.mxu0 0.0
    %96 = vmatprep.subr.mxu0 0.0
    %97 = vmatpush1.msra.mxu0 0.0
    %98 = vmatprep.subr.mxu0 0.0
    %99 = vmatpush1.msra.mxu0 0.0
    %100 = vmatprep.subr.mxu0 0.0
    %101 = vmatpush1.msra.mxu0 0.0
    %102 = vmatprep.subr.mxu0 0.0
    %103 = vmatpush1.msra.mxu0 0.0
    %104 = vmatprep.subr.mxu0 0.0
    %105 = vmatpush1.msra.mxu0 0.0
    %106 = vmatprep.subr.mxu0 0.0
    %107 = vmatpush1.msra.mxu0 0.0
    %108 = vmatprep.subr.mxu0 0.0
    %109 = vmatpush1.msra.mxu0 0.0
    %110 = vmatprep.subr.mxu0 0.0
    %111 = vmatpush1.msra.mxu0 0.0
    %112 = vmatprep.subr.mxu0 0.0
    %113 = vmatpush1.msra.mxu0 0.0
    %114 = vmatprep.subr.mxu0 0.0
    %115 = vmatpush1.msra.mxu0 0.0
    %116 = vmatprep.subr.mxu0 0.0
    %117 = vmatpush1.msra.mxu0 0.0
    %118 = vmatprep.subr.mxu0 0.0
    %119 = vmatpush1.msra.mxu0 0.0
    %120 = vmatprep.subr.mxu0 0.0
    %121 = vmatpush1.msra.mxu0 0.0
    %122 = vmatprep.subr.mxu0 0.0
    %123 = vmatpush1.msra.mxu0 0.0
    %124 = vmatprep.subr.mxu0 0.0
    %125 = vmatpush1.msra.mxu0 0.0
    %126 = vmatprep.subr.mxu0 0.0
    %127 = vmatpush1.msra.mxu0 0.0
    %128 = vmatprep.mubr.f32.mxu0 0.0
    %129 = vmatmul.mubr.f32.gmra.mrb[0].mxu0 %v62
    %v130 = vpop.f32.mrb[0].mxu0
    %v131 = vadd.f32 %v53, %v130
    %v132 = vpop.f32.mrb[0].mxu0
    %v133 = vadd.f32 %v57, %v132
    %134 = vdwg.mxu0
    %v135 = vmax.f32 %v131, 0.0
    %v136 = vmax.f32 %v133, 0.0
    %v137 = vpack.c.bf16 %v135, %v135
    %v138 = vpack.c.bf16 %v136, %v136
    %v139 = vld [vmem:[#allocation2] sm:$0xff]
    %v140 = vld [vmem:[#allocation2 + $0x8] sm:$0xff]
    %v141 = vld [vmem:[#allocation2 + $0x10] sm:$0xff]
    %v142 = vld [vmem:[#allocation2 + $0x18] sm:$0xff]
    %v143 = vld [vmem:[#allocation2 + $0x20] sm:$0xff]
    %v144 = vld [vmem:[#allocation2 + $0x28] sm:$0xff]
    %v145 = vld [vmem:[#allocation2 + $0x30] sm:$0xff]
    %v146 = vld [vmem:[#allocation2 + $0x38] sm:$0xff]
    %v147 = vld [vmem:[#allocation2 + $0x40] sm:$0xff]
    %v148 = vld [vmem:[#allocation2 + $0x48] sm:$0xff]
    %v149 = vld [vmem:[#allocation2 + $0x50] sm:$0xff]
    %v150 = vld [vmem:[#allocation2 + $0x58] sm:$0xff]
    %v151 = vld [vmem:[#allocation2 + $0x60] sm:$0xff]
    %v152 = vld [vmem:[#allocation2 + $0x68] sm:$0xff]
    %v153 = vld [vmem:[#allocation2 + $0x70] sm:$0xff]
    %v154 = vld [vmem:[#allocation2 + $0x78] sm:$0xff]
    %v155 = vld [vmem:[#allocation2 + $0x80] sm:$0xff]
    %v156 = vld [vmem:[#allocation2 + $0x88] sm:$0xff]
    %v157 = vld [vmem:[#allocation2 + $0x90] sm:$0xff]
    %v158 = vld [vmem:[#allocation2 + $0x98] sm:$0xff]
    %v159 = vld [vmem:[#allocation2 + $0xa0] sm:$0xff]
    %v160 = vld [vmem:[#allocation2 + $0xa8] sm:$0xff]
    %v161 = vld [vmem:[#allocation2 + $0xb0] sm:$0xff]
    %v162 = vld [vmem:[#allocation2 + $0xb8] sm:$0xff]
    %v163 = vld [vmem:[#allocation2 + $0xc0] sm:$0xff]
    %v164 = vld [vmem:[#allocation2 + $0xc8] sm:$0xff]
    %v165 = vld [vmem:[#allocation2 + $0xd0] sm:$0xff]
    %v166 = vld [vmem:[#allocation2 + $0xd8] sm:$0xff]
    %v167 = vld [vmem:[#allocation2 + $0xe0] sm:$0xff]
    %v168 = vld [vmem:[#allocation2 + $0xe8] sm:$0xff]
    %v169 = vld [vmem:[#allocation2 + $0xf0] sm:$0xff]
    %v170 = vld [vmem:[#allocation2 + $0xf8] sm:$0xff]
    %v171 = vld [vmem:[%s4] sm:$0x3]
    %v173 = vlaneseq
    %v174 = vshrl.u32 %v173, 7
    %v175 = vsub.s32 0, %v174
    %v176 = vrot.slane %v171, %v175
    %v177 = vlaneseq
    %v178 = vshrl.u32 %v177, 7
    %v179 = vsub.s32 1, %v178
    %v180 = vrot.slane %v171, %v179
    %v215 = vunpack.c.l.b16 %v139
    %v216 = vunpack.c.h.b16 %v139
    %v217 = vunpack.c.l.b16 %v140
    %v218 = vunpack.c.h.b16 %v140
    %v219 = vunpack.c.l.b16 %v141
    %v220 = vunpack.c.h.b16 %v141
    %v221 = vunpack.c.l.b16 %v142
    %v222 = vunpack.c.h.b16 %v142
    %v223 = vunpack.c.l.b16 %v143
    %v224 = vunpack.c.h.b16 %v143
    %v225 = vunpack.c.l.b16 %v144
    %v226 = vunpack.c.h.b16 %v144
    %v227 = vunpack.c.l.b16 %v145
    %v228 = vunpack.c.h.b16 %v145
    %v229 = vunpack.c.l.b16 %v146
    %v230 = vunpack.c.h.b16 %v146
    %v231 = vunpack.c.l.b16 %v147
    %v232 = vunpack.c.h.b16 %v147
    %v233 = vunpack.c.l.b16 %v148
    %v234 = vunpack.c.h.b16 %v148
    %v235 = vunpack.c.l.b16 %v149
    %v236 = vunpack.c.h.b16 %v149
    %v237 = vunpack.c.l.b16 %v150
    %v238 = vunpack.c.h.b16 %v150
    %v239 = vunpack.c.l.b16 %v151
    %v240 = vunpack.c.h.b16 %v151
    %v241 = vunpack.c.l.b16 %v152
    %v242 = vunpack.c.h.b16 %v152
    %v243 = vunpack.c.l.b16 %v153
    %v244 = vunpack.c.h.b16 %v153
    %v245 = vunpack.c.l.b16 %v154
    %v246 = vunpack.c.h.b16 %v154
    %v247 = vunpack.c.l.b16 %v155
    %v248 = vunpack.c.h.b16 %v155
    %v249 = vunpack.c.l.b16 %v156
    %v250 = vunpack.c.h.b16 %v156
    %v251 = vunpack.c.l.b16 %v157
    %v252 = vunpack.c.h.b16 %v157
    %v253 = vunpack.c.l.b16 %v158
    %v254 = vunpack.c.h.b16 %v158
    %v255 = vunpack.c.l.b16 %v159
    %v256 = vunpack.c.h.b16 %v159
    %v257 = vunpack.c.l.b16 %v160
    %v258 = vunpack.c.h.b16 %v160
    %v259 = vunpack.c.l.b16 %v161
    %v260 = vunpack.c.h.b16 %v161
    %v261 = vunpack.c.l.b16 %v162
    %v262 = vunpack.c.h.b16 %v162
    %v263 = vunpack.c.l.b16 %v163
    %v264 = vunpack.c.h.b16 %v163
    %v265 = vunpack.c.l.b16 %v164
    %v266 = vunpack.c.h.b16 %v164
    %v267 = vunpack.c.l.b16 %v165
    %v268 = vunpack.c.h.b16 %v165
    %v269 = vunpack.c.l.b16 %v166
    %v270 = vunpack.c.h.b16 %v166
    %v271 = vunpack.c.l.b16 %v167
    %v272 = vunpack.c.h.b16 %v167
    %v273 = vunpack.c.l.b16 %v168
    %v274 = vunpack.c.h.b16 %v168
    %v275 = vunpack.c.l.b16 %v169
    %v276 = vunpack.c.h.b16 %v169
    %v277 = vunpack.c.l.b16 %v170
    %v278 = vunpack.c.h.b16 %v170
    %v279 = vpack.c.b16 %v217, %v215
    %v280 = vpack.c.b16 %v218, %v216
    %v281 = vpack.c.b16 %v221, %v219
    %v282 = vpack.c.b16 %v222, %v220
    %v283 = vpack.c.b16 %v225, %v223
    %v284 = vpack.c.b16 %v226, %v224
    %v285 = vpack.c.b16 %v229, %v227
    %v286 = vpack.c.b16 %v230, %v228
    %v287 = vpack.c.b16 %v233, %v231
    %v288 = vpack.c.b16 %v234, %v232
    %v289 = vpack.c.b16 %v237, %v235
    %v290 = vpack.c.b16 %v238, %v236
    %v291 = vpack.c.b16 %v241, %v239
    %v292 = vpack.c.b16 %v242, %v240
    %v293 = vpack.c.b16 %v245, %v243
    %v294 = vpack.c.b16 %v246, %v244
    %v295 = vpack.c.b16 %v249, %v247
    %v296 = vpack.c.b16 %v250, %v248
    %v297 = vpack.c.b16 %v253, %v251
    %v298 = vpack.c.b16 %v254, %v252
    %v299 = vpack.c.b16 %v257, %v255
    %v300 = vpack.c.b16 %v258, %v256
    %v301 = vpack.c.b16 %v261, %v259
    %v302 = vpack.c.b16 %v262, %v260
    %v303 = vpack.c.b16 %v265, %v263
    %v304 = vpack.c.b16 %v266, %v264
    %v305 = vpack.c.b16 %v269, %v267
    %v306 = vpack.c.b16 %v270, %v268
    %v307 = vpack.c.b16 %v273, %v271
    %v308 = vpack.c.b16 %v274, %v272
    %v309 = vpack.c.b16 %v277, %v275
    %v310 = vpack.c.b16 %v278, %v276
    %343 = vmatprep.subr.bf16.mxu0 %v280
    %344 = vmatpush1.bf16.msra.mxu0 %v279
    %345 = vmatprep.subr.bf16.mxu0 %v282
    %346 = vmatpush1.bf16.msra.mxu0 %v281
    %347 = vmatprep.subr.bf16.mxu0 %v284
    %348 = vmatpush1.bf16.msra.mxu0 %v283
    %349 = vmatprep.subr.bf16.mxu0 %v286
    %350 = vmatpush1.bf16.msra.mxu0 %v285
    %351 = vmatprep.subr.bf16.mxu0 %v288
    %352 = vmatpush1.bf16.msra.mxu0 %v287
    %353 = vmatprep.subr.bf16.mxu0 %v290
    %354 = vmatpush1.bf16.msra.mxu0 %v289
    %355 = vmatprep.subr.bf16.mxu0 %v292
    %356 = vmatpush1.bf16.msra.mxu0 %v291
    %357 = vmatprep.subr.bf16.mxu0 %v294
    %358 = vmatpush1.bf16.msra.mxu0 %v293
    %359 = vmatprep.subr.bf16.mxu0 %v296
    %360 = vmatpush1.bf16.msra.mxu0 %v295
    %361 = vmatprep.subr.bf16.mxu0 %v298
    %362 = vmatpush1.bf16.msra.mxu0 %v297
    %363 = vmatprep.subr.bf16.mxu0 %v300
    %364 = vmatpush1.bf16.msra.mxu0 %v299
    %365 = vmatprep.subr.bf16.mxu0 %v302
    %366 = vmatpush1.bf16.msra.mxu0 %v301
    %367 = vmatprep.subr.bf16.mxu0 %v304
    %368 = vmatpush1.bf16.msra.mxu0 %v303
    %369 = vmatprep.subr.bf16.mxu0 %v306
    %370 = vmatpush1.bf16.msra.mxu0 %v305
    %371 = vmatprep.subr.bf16.mxu0 %v308
    %372 = vmatpush1.bf16.msra.mxu0 %v307
    %373 = vmatprep.subr.bf16.mxu0 %v310
    %374 = vmatpush1.bf16.msra.mxu0 %v309
    %375 = vmatprep.mubr.bf16.mxu0 %v138
    %376 = vmatmul.mubr.bf16.gmra.mrb[0].mxu0 %v137
    %v377 = vpop.f32.mrb[0].mxu0
    %v378 = vadd.f32 %v176, %v377
    %v379 = vpop.f32.mrb[0].mxu0
    %v380 = vadd.f32 %v180, %v379
    %v381 = vpop.f32.mrb[0].mxu0
    %v382 = vpop.f32.mrb[0].mxu0
    %383 = vdwg.mxu0
    %v384 = vmax.f32 %v378, 0.0
    %v385 = vmax.f32 %v380, 0.0
    %v386 = vpack.c.bf16 %v384, %v384
    %v387 = vpack.c.bf16 %v385, %v385
    %v388 = vld [vmem:[%s5] sm:$0xf]
    %v389 = vld [vmem:[%s5 + $0x4] sm:$0xf]
    %v390 = vld [vmem:[%s5 + $0x8] sm:$0xf]
    %v391 = vld [vmem:[%s5 + $0xc] sm:$0xf]
    %v392 = vld [vmem:[%s5 + $0x10] sm:$0xf]
    %v393 = vld [vmem:[%s5 + $0x14] sm:$0xf]
    %v394 = vld [vmem:[%s5 + $0x18] sm:$0xf]
    %v395 = vld [vmem:[%s5 + $0x1c] sm:$0xf]
    %v396 = vld [vmem:[%s5 + $0x20] sm:$0xf]
    %v397 = vld [vmem:[%s5 + $0x24] sm:$0xf]
    %v398 = vld [vmem:[%s5 + $0x28] sm:$0xf]
    %v399 = vld [vmem:[%s5 + $0x2c] sm:$0xf]
    %v400 = vld [vmem:[%s5 + $0x30] sm:$0xf]
    %v401 = vld [vmem:[%s5 + $0x34] sm:$0xf]
    %v402 = vld [vmem:[%s5 + $0x38] sm:$0xf]
    %v403 = vld [vmem:[%s5 + $0x3c] sm:$0xf]
    %v404 = vld [vmem:[%s5 + $0x40] sm:$0xf]
    %v405 = vld [vmem:[%s5 + $0x44] sm:$0xf]
    %v406 = vld [vmem:[%s5 + $0x48] sm:$0xf]
    %v407 = vld [vmem:[%s5 + $0x4c] sm:$0xf]
    %v408 = vld [vmem:[%s5 + $0x50] sm:$0xf]
    %v409 = vld [vmem:[%s5 + $0x54] sm:$0xf]
    %v410 = vld [vmem:[%s5 + $0x58] sm:$0xf]
    %v411 = vld [vmem:[%s5 + $0x5c] sm:$0xf]
    %v412 = vld [vmem:[%s5 + $0x60] sm:$0xf]
    %v413 = vld [vmem:[%s5 + $0x64] sm:$0xf]
    %v414 = vld [vmem:[%s5 + $0x68] sm:$0xf]
    %v415 = vld [vmem:[%s5 + $0x6c] sm:$0xf]
    %v416 = vld [vmem:[%s5 + $0x70] sm:$0xf]
    %v417 = vld [vmem:[%s5 + $0x74] sm:$0xf]
    %v418 = vld [vmem:[%s5 + $0x78] sm:$0xf]
    %v419 = vld [vmem:[%s5 + $0x7c] sm:$0xf]
    %v420 = vld [vmem:[%s6] sm:$0x1]
    %v422 = vlaneseq
    %v423 = vshrl.u32 %v422, 7
    %v424 = vsub.s32 0, %v423
    %v425 = vrot.slane %v420, %v424
    %v459 = vunpack.c.l.b16 %v388
    %v460 = vunpack.c.l.b16 %v389
    %v461 = vunpack.c.l.b16 %v390
    %v462 = vunpack.c.l.b16 %v391
    %v463 = vunpack.c.l.b16 %v392
    %v464 = vunpack.c.l.b16 %v393
    %v465 = vunpack.c.l.b16 %v394
    %v466 = vunpack.c.l.b16 %v395
    %v467 = vunpack.c.l.b16 %v396
    %v468 = vunpack.c.l.b16 %v397
    %v469 = vunpack.c.l.b16 %v398
    %v470 = vunpack.c.l.b16 %v399
    %v471 = vunpack.c.l.b16 %v400
    %v472 = vunpack.c.l.b16 %v401
    %v473 = vunpack.c.l.b16 %v402
    %v474 = vunpack.c.l.b16 %v403
    %v475 = vunpack.c.l.b16 %v404
    %v476 = vunpack.c.l.b16 %v405
    %v477 = vunpack.c.l.b16 %v406
    %v478 = vunpack.c.l.b16 %v407
    %v479 = vunpack.c.l.b16 %v408
    %v480 = vunpack.c.l.b16 %v409
    %v481 = vunpack.c.l.b16 %v410
    %v482 = vunpack.c.l.b16 %v411
    %v483 = vunpack.c.l.b16 %v412
    %v484 = vunpack.c.l.b16 %v413
    %v485 = vunpack.c.l.b16 %v414
    %v486 = vunpack.c.l.b16 %v415
    %v487 = vunpack.c.l.b16 %v416
    %v488 = vunpack.c.l.b16 %v417
    %v489 = vunpack.c.l.b16 %v418
    %v490 = vunpack.c.l.b16 %v419
    %v491 = vpack.c.b16 %v460, %v459
    %v492 = vpack.c.b16 %v462, %v461
    %v493 = vpack.c.b16 %v464, %v463
    %v494 = vpack.c.b16 %v466, %v465
    %v495 = vpack.c.b16 %v468, %v467
    %v496 = vpack.c.b16 %v470, %v469
    %v497 = vpack.c.b16 %v472, %v471
    %v498 = vpack.c.b16 %v474, %v473
    %v499 = vpack.c.b16 %v476, %v475
    %v500 = vpack.c.b16 %v478, %v477
    %v501 = vpack.c.b16 %v480, %v479
    %v502 = vpack.c.b16 %v482, %v481
    %v503 = vpack.c.b16 %v484, %v483
    %v504 = vpack.c.b16 %v486, %v485
    %v505 = vpack.c.b16 %v488, %v487
    %v506 = vpack.c.b16 %v490, %v489
    %523 = vmatprep.subr.bf16.mxu0 0
    %524 = vmatpush1.bf16.msra.mxu0 %v491
    %525 = vmatprep.subr.bf16.mxu0 0
    %526 = vmatpush1.bf16.msra.mxu0 %v492
    %527 = vmatprep.subr.bf16.mxu0 0
    %528 = vmatpush1.bf16.msra.mxu0 %v493
    %529 = vmatprep.subr.bf16.mxu0 0
    %530 = vmatpush1.bf16.msra.mxu0 %v494
    %531 = vmatprep.subr.bf16.mxu0 0
    %532 = vmatpush1.bf16.msra.mxu0 %v495
    %533 = vmatprep.subr.bf16.mxu0 0
    %534 = vmatpush1.bf16.msra.mxu0 %v496
    %535 = vmatprep.subr.bf16.mxu0 0
    %536 = vmatpush1.bf16.msra.mxu0 %v497
    %537 = vmatprep.subr.bf16.mxu0 0
    %538 = vmatpush1.bf16.msra.mxu0 %v498
    %539 = vmatprep.subr.bf16.mxu0 0
    %540 = vmatpush1.bf16.msra.mxu0 %v499
    %541 = vmatprep.subr.bf16.mxu0 0
    %542 = vmatpush1.bf16.msra.mxu0 %v500
    %543 = vmatprep.subr.bf16.mxu0 0
    %544 = vmatpush1.bf16.msra.mxu0 %v501
    %545 = vmatprep.subr.bf16.mxu0 0
    %546 = vmatpush1.bf16.msra.mxu0 %v502
    %547 = vmatprep.subr.bf16.mxu0 0
    %548 = vmatpush1.bf16.msra.mxu0 %v503
    %549 = vmatprep.subr.bf16.mxu0 0
    %550 = vmatpush1.bf16.msra.mxu0 %v504
    %551 = vmatprep.subr.bf16.mxu0 0
    %552 = vmatpush1.bf16.msra.mxu0 %v505
    %553 = vmatprep.subr.bf16.mxu0 0
    %554 = vmatpush1.bf16.msra.mxu0 %v506
    %555 = vmatprep.mubr.bf16.mxu0 %v387
    %556 = vmatmul.mubr.bf16.gmra.mrb[0].mxu0 %v386
    %v557 = vpop.f32.mrb[0].mxu0
    %v558 = vadd.f32 %v425, %v557
    %v559 = vpop.f32.mrb[0].mxu0
    %v560 = vpop.f32.mrb[0].mxu0
    %v561 = vpop.f32.mrb[0].mxu0
    %562 = vdwg.mxu0
    %v563 = vpack.c.bf16 %v558, %v558
    %vm564 = vcmask 257024
    %565 = vst.msk [vmem:[#allocation5] sm:$0xf] %vm564, %v563
    // Predicated region
    $region34: #{tpu_custom_call.1} parent=1 // pred_check
      _
    $region35: #{tpu_custom_call.1} parent=1 // pred_check_branch
      %567 = sbr.rel (0) target = $region37
    $region36: #{tpu_custom_call.1} parent=1 // pred_region
      %s569 = ssub.s32 64, 64
      %570 = vsyncadd [#allocation4], %s569
      %s572 = sshll.u32 [#allocation5], 4
      %s573 = int_to_ptr.vmem [resolvable:$true] %s572
      %575 = dma.vmem_to_hbm [thread:$0]  %s573, 64, %s7, [#allocation4]
    $region37: #{tpu_custom_call.1} parent=1 // pred_fallthru
      _
    // Predicated region
    $region38: #{tpu_custom_call.1} parent=1 // pred_check
      _
    $region39: #{tpu_custom_call.1} parent=1 // pred_check_branch
      %577 = sbr.rel (0) target = $region41
    $region40: #{tpu_custom_call.1} parent=1 // pred_region
      %578 = dma.done [#allocation4], 64
    $region41: #{tpu_custom_call.1} parent=1 // pred_fallthru
      _
    %579 = vsyncpa [#allocation3], 1
    %580 = vsyncpa [#allocation4], 1

</llo_original>
